<compile_context>
chip_gen: v5e
topology: v5e:2x2
jax: 0.10.0
libtpu: 0.0.40
codegen_flags: <defaults>
</compile_context>

<pallas_src>
import functools

import jax
import jax.numpy as jnp
from jax import lax
from jax.experimental import pallas as pl
from jax.experimental.pallas import tpu as pltpu

LANES = 128
TARGET_BLOCK_ROWS = 4096      # (4096, 128) f32 = 2 MiB per input tile per step


def _round_up(x, m):
    return (x + m - 1) // m * m


def _sublane_multiple(dtype):
    # Minimum legal sublane tile: 8 rows for 32-bit, 16 for 16-bit, 32 for 8-bit.
    itemsize = jnp.dtype(dtype).itemsize
    return max(8, 32 // max(1, itemsize))


def _num_tensorcores():
    # v7x exposes two TensorCores per chip; v5e / v6e have one.
    try:
        kind = jax.devices()[0].device_kind.lower()
    except Exception:
        return 1
    return 2 if ("v7" in kind or "7x" in kind) else 1


def _bce_blur_kernel(pred_ref, true_ref, out_ref, acc_ref, *,
                     alpha_inv, n_total, n_inner):
    j = pl.program_id(0)          # parallel slice (TensorCore on v7x)
    k = pl.program_id(1)          # sequential streaming step
    block_rows, lanes = acc_ref.shape

    @pl.when(k == 0)
    def _():
        acc_ref[...] = jnp.zeros_like(acc_ref)

    x = pred_ref[...].astype(jnp.float32)
    y = true_ref[...].astype(jnp.float32)

    # Numerically stable BCE-with-logits (same as PyTorch):
    #   max(x, 0) - x*y + log(1 + exp(-|x|))
    e = jnp.exp(-jnp.abs(x))
    loss = jnp.maximum(x, 0.0) - x * y + jnp.log1p(e)

    # sigmoid(x) = 0.5*tanh(0.5*x) + 0.5 : single EUP op, no f32 divide.
    p = 0.5 * jnp.tanh(0.5 * x) + 0.5

    dx = p - y
    # (dx - 1) / (alpha + 1e-4) with the reciprocal folded into a constant mul.
    loss = loss * (1.0 - jnp.exp((dx - 1.0) * alpha_inv))

    # Ragged-tail mask from the logical global flat index.  Covers both the
    # partial last row-block (the DMA window is clamped; out-of-range buffer
    # contents are undefined) and the sub-128 lane remainder, so the wrapper
    # never materializes padded copies of the inputs.  Cheap VALU filler in a
    # mem-bound loop.
    rb = j * n_inner + k                                   # logical row-block
    row = lax.broadcasted_iota(jnp.int32, (block_rows, lanes), 0)
    lane = lax.broadcasted_iota(jnp.int32, (block_rows, lanes), 1)
    flat = (rb * block_rows + row) * lanes + lane
    loss = jnp.where(flat < n_total, loss, 0.0)

    # Lane/sublane-preserving accumulation: pure VALU add every step.
    acc_ref[...] += loss

    @pl.when(k == pl.num_programs(1) - 1)
    def _():
        # Fold the (block_rows, 128) accumulator into one aligned (8, 128)
        # tile per parallel slice (tree-add over intact (8,128) tiles; no
        # cross-lane reduce in-kernel).
        out_ref[...] = acc_ref[...].reshape(-1, 8, lanes).sum(axis=0)


def bce_blur_with_logits_loss(pred, true, alpha=0.05):
    """Pallas TPU implementation of BCEBlurWithLogitsLoss.forward."""
    assert pred.shape == true.shape
    n_total = pred.size

    pred_flat = jnp.ravel(pred)
    true_flat = jnp.ravel(true)

    # (rows, 128) view of the flat stream.  Pad only when the element count
    # is not a multiple of 128 (pad value irrelevant: kernel masks by n_total).
    rem = n_total % LANES
    if rem:
        pad = LANES - rem
        pred_flat = jnp.pad(pred_flat, (0, pad))
        true_flat = jnp.pad(true_flat, (0, pad))
    rows = pred_flat.size // LANES
    pred2d = pred_flat.reshape(rows, LANES)
    true2d = true_flat.reshape(rows, LANES)

    row_mult = max(_sublane_multiple(pred.dtype), _sublane_multiple(true.dtype))

    num_splits = _num_tensorcores()
    if rows < 2 * row_mult:        # not enough rows to give each core a tile
        num_splits = 1

    block_rows = min(
        _round_up(TARGET_BLOCK_ROWS, row_mult),
        _round_up(pl.cdiv(rows, num_splits), row_mult),
    )
    total_blocks = pl.cdiv(rows, block_rows)
    n_inner = pl.cdiv(total_blocks, num_splits)

    def in_index_map(j, k):
        # Clamp so the DMA window of (rare) fully-out-of-range grid points
        # stays inside the array; the kernel-side mask zeroes their output.
        return (jnp.minimum(j * n_inner + k, total_blocks - 1), 0)

    kernel = functools.partial(
        _bce_blur_kernel,
        alpha_inv=float(1.0 / (alpha + 1e-4)),
        n_total=int(n_total),
        n_inner=int(n_inner),
    )

    partial_sums = pl.pallas_call(
        kernel,
        out_shape=jax.ShapeDtypeStruct((num_splits * 8, LANES), jnp.float32),
        grid_spec=pltpu.PrefetchScalarGridSpec(
            num_scalar_prefetch=0,
            grid=(num_splits, n_inner),
            in_specs=[
                pl.BlockSpec((block_rows, LANES), in_index_map),
                pl.BlockSpec((block_rows, LANES), in_index_map),
            ],
            out_specs=pl.BlockSpec((8, LANES), lambda j, k: (j, 0)),
            scratch_shapes=[pltpu.VMEM((block_rows, LANES), jnp.float32)],
        ),
        compiler_params=pltpu.CompilerParams(
            dimension_semantics=("parallel", "arbitrary"),
        ),
    )(pred2d, true2d)

    return jnp.sum(partial_sums) / jnp.float32(n_total)


def _reference(pred, true, alpha=0.05):
    x = pred.astype(jnp.float32)
    y = true.astype(jnp.float32)
    loss = jnp.maximum(x, 0.0) - x * y + jnp.log1p(jnp.exp(-jnp.abs(x)))
    p = jax.nn.sigmoid(x)
    dx = p - y
    loss = loss * (1.0 - jnp.exp((dx - 1.0) / (alpha + 1e-4)))
    return jnp.mean(loss)


if __name__ == "__main__":
    key = jax.random.PRNGKey(0)
    k1, k2 = jax.random.split(key)
    # layout: NCHW, B=2 C=4 H=16 W=16 (logits + binary-ish targets)
    pred = jax.random.normal(k1, (2, 4, 16, 16), dtype=jnp.float32)
    true = (jax.random.uniform(k2, (2, 4, 16, 16)) > 0.5).astype(jnp.float32)

    out = bce_blur_with_logits_loss(pred, true, alpha=0.05)
    out = jax.block_until_ready(out)

    ref = _reference(pred, true, alpha=0.05)
    assert jnp.allclose(out, ref, rtol=1e-5, atol=1e-6), (out, ref)
    print("KERNEL_OK")
</pallas_src>

<mosaic_0001>
module attributes {stable_mosaic.version = 11 : i64} {
  func.func @_bce_blur_kernel(%arg0: i32, %arg1: i32, %arg2: memref<16x128xf32, #tpu.memory_space<vmem>>, %arg3: memref<16x128xf32, #tpu.memory_space<vmem>>, %arg4: memref<8x128xf32, #tpu.memory_space<vmem>>, %arg5: memref<16x128xf32, #tpu.memory_space<vmem>>) attributes {dimension_semantics = [#tpu.dimension_semantics<parallel>, #tpu.dimension_semantics<arbitrary>], iteration_bounds = array<i64: 1, 1>, scalar_prefetch = 0 : i64, scratch_operands = 1 : i64, tpu.core_type = #tpu.core_type<tc>, window_params = [{transform_indices = @transform_0, window_bounds = array<i64: 16, 128>}, {transform_indices = @transform_1, window_bounds = array<i64: 16, 128>}, {transform_indices = @transform_2, window_bounds = array<i64: 8, 128>}]} {
    %c0_i32 = arith.constant 0 : i32
    %0 = arith.cmpi eq, %arg1, %c0_i32 : i32
    %1 = arith.extui %0 : i1 to i32
    %c0_i32_0 = arith.constant 0 : i32
    %2 = arith.cmpi ne, %1, %c0_i32_0 : i32
    scf.if %2 {
      %cst_18 = arith.constant 0.000000e+00 : f32
      %51 = vector.broadcast %cst_18 : f32 to vector<16x128xf32>
      %c0_19 = arith.constant 0 : index
      %c0_20 = arith.constant 0 : index
      %52 = vector.load %arg5[%c0_19, %c0_20] : memref<16x128xf32, #tpu.memory_space<vmem>>, vector<16x128xf32>
      tpu.vector_store %arg5[%c0_19, %c0_20], %51 {strides = array<i32>} : memref<16x128xf32, #tpu.memory_space<vmem>>, vector<16x128xf32>,
    } else {
    }
    %c0 = arith.constant 0 : index
    %c0_1 = arith.constant 0 : index
    %3 = vector.load %arg2[%c0, %c0_1] : memref<16x128xf32, #tpu.memory_space<vmem>>, vector<16x128xf32>
    %c0_2 = arith.constant 0 : index
    %c0_3 = arith.constant 0 : index
    %4 = vector.load %arg3[%c0_2, %c0_3] : memref<16x128xf32, #tpu.memory_space<vmem>>, vector<16x128xf32>
    %5 = math.absf %3 : vector<16x128xf32>
    %cst = arith.constant 0.000000e+00 : f32
    %6 = vector.broadcast %cst : f32 to vector<16x128xf32>
    %7 = arith.subf %6, %5 : vector<16x128xf32>
    %8 = math.exp %7 : vector<16x128xf32>
    %cst_4 = arith.constant 0.000000e+00 : f32
    %9 = vector.broadcast %cst_4 : f32 to vector<16x128xf32>
    %10 = arith.maximumf %3, %9 : vector<16x128xf32>
    %11 = arith.mulf %3, %4 : vector<16x128xf32>
    %12 = arith.subf %10, %11 : vector<16x128xf32>
    %13 = math.log1p %8 : vector<16x128xf32>
    %14 = arith.addf %12, %13 : vector<16x128xf32>
    %cst_5 = arith.constant 5.000000e-01 : f32
    %15 = vector.broadcast %cst_5 : f32 to vector<16x128xf32>
    %16 = arith.mulf %15, %3 : vector<16x128xf32>
    %17 = math.tanh %16 : vector<16x128xf32>
    %cst_6 = arith.constant 5.000000e-01 : f32
    %18 = vector.broadcast %cst_6 : f32 to vector<16x128xf32>
    %19 = arith.mulf %18, %17 : vector<16x128xf32>
    %cst_7 = arith.constant 5.000000e-01 : f32
    %20 = vector.broadcast %cst_7 : f32 to vector<16x128xf32>
    %21 = arith.addf %19, %20 : vector<16x128xf32>
    %22 = arith.subf %21, %4 : vector<16x128xf32>
    %cst_8 = arith.constant 1.000000e+00 : f32
    %23 = vector.broadcast %cst_8 : f32 to vector<16x128xf32>
    %24 = arith.subf %22, %23 : vector<16x128xf32>
    %cst_9 = arith.constant 19.9600792 : f32
    %25 = vector.broadcast %cst_9 : f32 to vector<16x128xf32>
    %26 = arith.mulf %24, %25 : vector<16x128xf32>
    %27 = math.exp %26 : vector<16x128xf32>
    %cst_10 = arith.constant 1.000000e+00 : f32
    %28 = vector.broadcast %cst_10 : f32 to vector<16x128xf32>
    %29 = arith.subf %28, %27 : vector<16x128xf32>
    %30 = arith.mulf %14, %29 : vector<16x128xf32>
    %c1_i32 = arith.constant 1 : i32
    %31 = arith.muli %arg0, %c1_i32 : i32
    %32 = arith.addi %31, %arg1 : i32
    %33 = tpu.iota {dimensions = array<i32: 0>} : vector<16x128xi32>
    %34 = tpu.iota {dimensions = array<i32: 1>} : vector<16x128xi32>
    %c16_i32 = arith.constant 16 : i32
    %35 = arith.muli %32, %c16_i32 : i32
    %36 = vector.broadcast %35 : i32 to vector<16x128xi32>
    %37 = arith.addi %36, %33 : vector<16x128xi32>
    %c128_i32 = arith.constant 128 : i32
    %38 = vector.broadcast %c128_i32 : i32 to vector<16x128xi32>
    %39 = arith.muli %37, %38 : vector<16x128xi32>
    %40 = arith.addi %39, %34 : vector<16x128xi32>
    %c2048_i32 = arith.constant 2048 : i32
    %41 = vector.broadcast %c2048_i32 : i32 to vector<16x128xi32>
    %42 = arith.cmpi slt, %40, %41 : vector<16x128xi32>
    %cst_11 = arith.constant 0.000000e+00 : f32
    %43 = vector.broadcast %cst_11 : f32 to vector<16x128xf32>
    %44 = arith.select %42, %30, %43 : vector<16x128xi1>, vector<16x128xf32>
    %c0_12 = arith.constant 0 : index
    %c0_13 = arith.constant 0 : index
    %45 = vector.load %arg5[%c0_12, %c0_13] : memref<16x128xf32, #tpu.memory_space<vmem>>, vector<16x128xf32>
    %46 = arith.addf %45, %44 : vector<16x128xf32>
    %c0_14 = arith.constant 0 : index
    %c0_15 = arith.constant 0 : index
    %47 = vector.load %arg5[%c0_14, %c0_15] : memref<16x128xf32, #tpu.memory_space<vmem>>, vector<16x128xf32>
    tpu.vector_store %arg5[%c0_14, %c0_15], %46 {strides = array<i32>} : memref<16x128xf32, #tpu.memory_space<vmem>>, vector<16x128xf32>,
    %c0_i32_16 = arith.constant 0 : i32
    %48 = arith.cmpi eq, %arg1, %c0_i32_16 : i32
    %49 = arith.extui %48 : i1 to i32
    %c0_i32_17 = arith.constant 0 : i32
    %50 = arith.cmpi ne, %49, %c0_i32_17 : i32
    scf.if %50 {
      %c0_18 = arith.constant 0 : index
      %c0_19 = arith.constant 0 : index
      %51 = vector.load %arg5[%c0_18, %c0_19] : memref<16x128xf32, #tpu.memory_space<vmem>>, vector<16x128xf32>
      %52 = vector.shape_cast %51 : vector<16x128xf32> to vector<2x8x128xf32>
      %cst_20 = arith.constant dense<0.000000e+00> : vector<8x128xf32>
      %53 = vector.multi_reduction <add>, %52, %cst_20 [0] : vector<2x8x128xf32> to vector<8x128xf32>
      %c0_21 = arith.constant 0 : index
      %c0_22 = arith.constant 0 : index
      %54 = vector.load %arg4[%c0_21, %c0_22] : memref<8x128xf32, #tpu.memory_space<vmem>>, vector<8x128xf32>
      tpu.vector_store %arg4[%c0_21, %c0_22], %53 {strides = array<i32>} : memref<8x128xf32, #tpu.memory_space<vmem>>, vector<8x128xf32>,
    } else {
    }
    return
  }
  func.func @transform_0(%arg0: i32, %arg1: i32) -> (i32, i32) {
    %c1_i32 = arith.constant 1 : i32
    %0 = arith.muli %arg0, %c1_i32 : i32
    %1 = arith.addi %0, %arg1 : i32
    %c0_i32 = arith.constant 0 : i32
    %2 = arith.minsi %1, %c0_i32 : i32
    %c0_i32_0 = arith.constant 0 : i32
    %c0_i32_1 = arith.constant 0 : i32
    return %2, %c0_i32_0 : i32, i32
  }
  func.func @transform_1(%arg0: i32, %arg1: i32) -> (i32, i32) {
    %c1_i32 = arith.constant 1 : i32
    %0 = arith.muli %arg0, %c1_i32 : i32
    %1 = arith.addi %0, %arg1 : i32
    %c0_i32 = arith.constant 0 : i32
    %2 = arith.minsi %1, %c0_i32 : i32
    %c0_i32_0 = arith.constant 0 : i32
    %c0_i32_1 = arith.constant 0 : i32
    return %2, %c0_i32_0 : i32, i32
  }
  func.func @transform_2(%arg0: i32, %arg1: i32) -> (i32, i32) {
    %c0_i32 = arith.constant 0 : i32
    %c0_i32_0 = arith.constant 0 : i32
    return %arg0, %c0_i32 : i32, i32
  }
}

</mosaic_0001>

<llo_original>
// kernel: tpu_custom_call.1
$region0: #{tpu_custom_call.1}
  #allocation0 [shape = 'u32[]', space=smem, size = 0x4, offset = 0x4, fixed_abs, tag = 'smem constant byte address 0x4 - core index']
  #allocation1 [shape = 'u32[72,128]{1,0:T(1,128)}', space=vmem, size = 0x9000, scoped, tag = 'internal scratch']
  #allocation2 [shape = 'f32[16,128]{1,0:T(8,128)}', space=vmem, size = 0x2000, scoped, tag = 'scratch operand']
  %s0 = inlined_call_operand.hbm [shape: f32[16,128], index: 0, kind: input, shape index: {}]
  %s1 = inlined_call_operand.hbm [shape: f32[16,128], index: 1, kind: input, shape index: {}]
  %s2 = inlined_call_operand.hbm [shape: f32[8,128], index: 2, kind: output, shape index: {}]
  %s3 = sld [smem:[#allocation0]]
  $region34: #{tpu_custom_call.1} parent=0
    _
  %s5 = ssub.s32 1, %s3
  %s6 = scalar_select 0, %s5, %s3
  $region1: #{tpu_custom_call.1} parent=0
    #allocation3 [shape = 'u8[8192]{0}', space=vmem, size = 0x2000, scoped, tag = 'input window, operand 0, single buffered']
    #allocation4 [shape = 's32[1]{0}', space=sflag, size = 0x4, scoped, tag = 'scoped memory for tpu_custom_call.1']
    #allocation5 [shape = 's32[1]{0}', space=sflag, size = 0x4, scoped, tag = 'scoped memory for tpu_custom_call.1']
    #allocation6 [shape = 'u8[8192]{0}', space=vmem, size = 0x2000, scoped, tag = 'input window, operand 1, single buffered']
    #allocation7 [shape = 's32[1]{0}', space=sflag, size = 0x4, scoped, tag = 'scoped memory for tpu_custom_call.1']
    #allocation8 [shape = 'u8[4096]{0}', space=vmem, size = 0x1000, scoped, tag = 'output window, operand 0, single buffered']
    %7 = vsyncpa [#allocation4], 0
    %8 = vsyncpa [#allocation7], 0
    %9 = vsyncpa [#allocation5], 0
    // Predicated region
    $region2: #{tpu_custom_call.1} parent=1 // pred_check
      _
    $region3: #{tpu_custom_call.1} parent=1 // pred_check_branch
      %11 = sbr.rel (0) target = $region5
    $region4: #{tpu_custom_call.1} parent=1 // pred_region
      %s12 = sadd.s32 0, 0
      %p13 = scmp.lt.s32.totalorder %s12, 0
      %s14 = scalar_select %p13, %s12, 0
      %s15 = smul.u32 2, %s14
      %17 = vsyncadd [#allocation4], 0
      %s18 = smul.addr %s15, 8
      %s19 = scalar_lea.hbm %s0, %s18
      %s20 = sshll.u32 %s19, 4
      %s21 = int_to_ptr.hbm [resolvable:$true] %s20
      %s22 = sshll.u32 [#allocation3], 4
      %s23 = int_to_ptr.vmem [resolvable:$true] %s22
      %28 = dma.hbm_to_vmem [thread:$0]  %s21, 256, %s23, [#allocation4], 128, 128, 8
    $region5: #{tpu_custom_call.1} parent=1 // pred_fallthru
      _
    // Predicated region
    $region6: #{tpu_custom_call.1} parent=1 // pred_check
      _
    $region7: #{tpu_custom_call.1} parent=1 // pred_check_branch
      %30 = sbr.rel (0) target = $region9
    $region8: #{tpu_custom_call.1} parent=1 // pred_region
      %s31 = sadd.s32 0, 0
      %p32 = scmp.lt.s32.totalorder %s31, 0
      %s33 = scalar_select %p32, %s31, 0
      %s34 = smul.u32 2, %s33
      %36 = vsyncadd [#allocation7], 0
      %s37 = smul.addr %s34, 8
      %s38 = scalar_lea.hbm %s1, %s37
      %s39 = sshll.u32 %s38, 4
      %s40 = int_to_ptr.hbm [resolvable:$true] %s39
      %s41 = sshll.u32 [#allocation6], 4
      %s42 = int_to_ptr.vmem [resolvable:$true] %s41
      %47 = dma.hbm_to_vmem [thread:$0]  %s40, 256, %s42, [#allocation7], 128, 128, 8
    $region9: #{tpu_custom_call.1} parent=1 // pred_fallthru
      _
    // Predicated region
    $region10: #{tpu_custom_call.1} parent=1 // pred_check
      _
    $region11: #{tpu_custom_call.1} parent=1 // pred_check_branch
      %49 = sbr.rel (0) target = $region13
    $region12: #{tpu_custom_call.1} parent=1 // pred_region
      %51 = dma.done [#allocation4], 256
    $region13: #{tpu_custom_call.1} parent=1 // pred_fallthru
      _
    // Predicated region
    $region14: #{tpu_custom_call.1} parent=1 // pred_check
      _
    $region15: #{tpu_custom_call.1} parent=1 // pred_check_branch
      %53 = sbr.rel (0) target = $region17
    $region16: #{tpu_custom_call.1} parent=1 // pred_region
      %55 = dma.done [#allocation7], 256
    $region17: #{tpu_custom_call.1} parent=1 // pred_fallthru
      _
    %s56 = sadd.s32 0, 0
    %p57 = scmp.lt.s32.totalorder %s56, 0
    %s58 = scalar_select %p57, %s56, 0
    %s59 = smul.u32 2, %s58
    %s60 = sadd.s32 0, 0
    %p61 = scmp.lt.s32.totalorder %s60, 0
    %s62 = scalar_select %p61, %s60, 0
    %s63 = smul.u32 2, %s62
    %p64 = scmp.eq.s32.totalorder 0, 0
    // Predicated region
    $region18: #{tpu_custom_call.1} parent=1 // pred_check
      %p65 = pneg %p64
    $region19: #{tpu_custom_call.1} parent=1 // pred_check_branch
      %67 = sbr.rel (%p65) target = $region21
    $region20: #{tpu_custom_call.1} parent=1 // pred_region
      %68 = vst [vmem:[#allocation2] sm:$0xff] 0.0
      %69 = vst [vmem:[#allocation2 + $0x8] sm:$0xff] 0.0
    $region21: #{tpu_custom_call.1} parent=1 // pred_fallthru
      _
    %v70 = vld [vmem:[#allocation3] sm:$0xff]
    %v71 = vld [vmem:[#allocation3 + $0x8] sm:$0xff]
    %v72 = vld [vmem:[#allocation6] sm:$0xff]
    %v73 = vld [vmem:[#allocation6 + $0x8] sm:$0xff]
    %v74 = vand.u32 2147483647, %v70
    %v75 = vand.u32 2147483647, %v71
    %v76 = vsub.f32 0.0, %v74
    %v77 = vsub.f32 0.0, %v75
    %v78 = vmul.f32 %v76, 1.442695
    %v79 = vpow.pop %v78
    %v80 = vmul.f32 %v77, 1.442695
    %v81 = vpow.pop %v80
    %v82 = vmax.f32 %v70, 0.0
    %v83 = vmax.f32 %v71, 0.0
    %v84 = vmul.f32 %v70, %v72
    %v85 = vmul.f32 %v71, %v73
    %v86 = vsub.f32 %v82, %v84
    %v87 = vsub.f32 %v83, %v85
    %v88 = vadd.f32 %v79, 1.0
    %v89 = vlog2.pop %v88
    %v90 = vmul.f32 %v89, 0.6931472
    %v91 = vmul.f32 -0.5, %v79
    %v92 = vadd.f32 %v91, 1.0
    %v93 = vmul.f32 %v92, %v79
    %v94 = vand.u32 2147483647, %v79
    %vm95 = vcmp.lt.f32.partialorder %v94, 0.0004427343
    %v96 = vsel %vm95, %v93, %v90
    %v97 = vadd.f32 %v81, 1.0
    %v98 = vlog2.pop %v97
    %v99 = vmul.f32 %v98, 0.6931472
    %v100 = vmul.f32 -0.5, %v81
    %v101 = vadd.f32 %v100, 1.0
    %v102 = vmul.f32 %v101, %v81
    %v103 = vand.u32 2147483647, %v81
    %vm104 = vcmp.lt.f32.partialorder %v103, 0.0004427343
    %v105 = vsel %vm104, %v102, %v99
    %v106 = vadd.f32 %v86, %v96
    %v107 = vadd.f32 %v87, %v105
    %v108 = vmul.f32 %v70, 0.5
    %v109 = vmul.f32 %v71, 0.5
    %v110 = vtanh.pop %v108
    %v111 = vtanh.pop %v109
    %v112 = vmul.f32 %v110, 0.5
    %v113 = vmul.f32 %v111, 0.5
    %v114 = vadd.f32 %v112, 0.5
    %v115 = vadd.f32 %v113, 0.5
    %v116 = vsub.f32 %v114, %v72
    %v117 = vsub.f32 %v115, %v73
    %v118 = vsub.f32 %v116, 1.0
    %v119 = vsub.f32 %v117, 1.0
    %v120 = vmul.f32 %v118, 19.96008
    %v121 = vmul.f32 %v119, 19.96008
    %v122 = vmul.f32 %v120, 1.442695
    %v123 = vpow.pop %v122
    %v124 = vmul.f32 %v121, 1.442695
    %v125 = vpow.pop %v124
    %v126 = vsub.f32 1.0, %v123
    %v127 = vsub.f32 1.0, %v125
    %v128 = vmul.f32 %v106, %v126
    %v129 = vmul.f32 %v107, %v127
    %s130 = sadd.s32 0, 0
    %v131 = vlaneseq
    %v132 = vshrl.u32 %v131, 7
    %v133 = vadd.s32 %v132, 8
    %v134 = vlaneseq
    %v135 = vand.u32 %v134, 127
    %s136 = smul.u32 %s130, 16
    %v137 = vstv %s136
    %v138 = vadd.s32 %v137, %v132
    %v139 = vadd.s32 %v137, %v133
    %v140 = vmul.u32 %v138, 128
    %v141 = vmul.u32 %v139, 128
    %v142 = vadd.s32 %v140, %v135
    %v143 = vadd.s32 %v141, %v135
    %vm144 = vcmp.lt.s32.totalorder %v142, 2048
    %vm145 = vcmp.lt.s32.totalorder %v143, 2048
    %v146 = vsel %vm144, %v128, 0.0
    %v147 = vsel %vm145, %v129, 0.0
    %v148 = vld [vmem:[#allocation2] sm:$0xff]
    %v149 = vld [vmem:[#allocation2 + $0x8] sm:$0xff]
    %v150 = vadd.f32 %v148, %v146
    %v151 = vadd.f32 %v149, %v147
    %152 = vst [vmem:[#allocation2] sm:$0xff] %v150
    %153 = vst [vmem:[#allocation2 + $0x8] sm:$0xff] %v151
    // Predicated region
    $region22: #{tpu_custom_call.1} parent=1 // pred_check
      %p154 = pneg %p64
    $region23: #{tpu_custom_call.1} parent=1 // pred_check_branch
      %156 = sbr.rel (%p154) target = $region25
    $region24: #{tpu_custom_call.1} parent=1 // pred_region
      %v157 = vld [vmem:[#allocation2] sm:$0xff]
      %v158 = vld [vmem:[#allocation2 + $0x8] sm:$0xff]
      %v159 = vadd.f32 %v157, %v158
      %160 = vst [vmem:[#allocation8] sm:$0xff] %v159
    $region25: #{tpu_custom_call.1} parent=1 // pred_fallthru
      _
    // Predicated region
    $region26: #{tpu_custom_call.1} parent=1 // pred_check
      _
    $region27: #{tpu_custom_call.1} parent=1 // pred_check_branch
      %162 = sbr.rel (0) target = $region29
    $region28: #{tpu_custom_call.1} parent=1 // pred_region
      %164 = vsyncadd [#allocation5], 0
      %s166 = sshll.u32 [#allocation8], 4
      %s167 = int_to_ptr.vmem [resolvable:$true] %s166
      %s168 = sshll.u32 %s2, 4
      %s169 = int_to_ptr.hbm [resolvable:$true] %s168
      %171 = dma.vmem_to_hbm [thread:$0]  %s167, 128, %s169, [#allocation5]
    $region29: #{tpu_custom_call.1} parent=1 // pred_fallthru
      _
    // Predicated region
    $region30: #{tpu_custom_call.1} parent=1 // pred_check
      _
    $region31: #{tpu_custom_call.1} parent=1 // pred_check_branch
      %173 = sbr.rel (0) target = $region33
    $region32: #{tpu_custom_call.1} parent=1 // pred_region
      %175 = dma.done [#allocation5], 128
    $region33: #{tpu_custom_call.1} parent=1 // pred_fallthru
      _
    %176 = vsyncpa [#allocation4], 1
    %177 = vsyncpa [#allocation7], 1
    %178 = vsyncpa [#allocation5], 1

</llo_original>
